<compile_context>
chip_gen: v6e
topology: v6e:2x2x1
jax: 0.10.0
libtpu: 0.0.40
codegen_flags: <defaults>
</compile_context>

<pallas_src>
import jax
import jax.numpy as jnp
from jax import lax
from jax.experimental import pallas as pl
from jax.experimental.pallas import tpu as pltpu


def _round_up(n: int, m: int) -> int:
    return ((n + m - 1) // m) * m


def _ensemble_linear_bn_relu_kernel(
    sample_ref,  # (1,) int32 scalar prefetch in SMEM -- consumed by index_maps
    x_ref,       # (TM, TK)   VMEM
    w_ref,       # (TN, TK)   VMEM -- selected member, PyTorch (D_out, D_in) layout
    ss_ref,      # (2, TN)    VMEM -- row 0: scale, row 1: shift (bias + BN folded)
    o_ref,       # (TM, TN)
    acc_ref,     # (TM, TN)   f32 scratch accumulator
):
    k = pl.program_id(1)

    @pl.when(k == 0)
    def _():
        acc_ref[...] = jnp.zeros_like(acc_ref)

    # x @ W^T : contract the D_in (last) axis of both tiles -> (TM, TN) on the MXU.
    acc_ref[...] += lax.dot_general(
        x_ref[...],
        w_ref[...],
        dimension_numbers=(((1,), (1,)), ((), ())),
        preferred_element_type=jnp.float32,
    )

    @pl.when(k == pl.num_programs(1) - 1)
    def _():
        ss = ss_ref[...]
        scale = ss[0:1, :]
        shift = ss[1:2, :]
        o_ref[...] = jnp.maximum(acc_ref[...] * scale + shift, 0.0).astype(o_ref.dtype)


def layer_ensemble_forward(
    x,              # (B, D_in) float32
    weights,        # (E, D_out, D_in) float32 -- PyTorch nn.Linear layout per member
    biases,         # (E, D_out) float32
    bn_gamma,       # (D_out,)
    bn_beta,        # (D_out,)
    bn_mean,        # (D_out,)  running_mean
    bn_var,         # (D_out,)  running_var
    sample: int,    # which ensemble member to run
    *,
    eps: float = 1e-3,
    block_b: int = 256,   # batch tile (multiple of 8)
    block_k: int = 512,   # D_in reduction tile (multiple of 128)
):
    E, D_out, D_in = weights.shape
    B = x.shape[0]

    # Fold bias + eval-mode BatchNorm into per-channel scale/shift (O(E*D_out) host work):
    #   y = (x @ W[s].T + b[s] - mean) * gamma * rsqrt(var+eps) + beta
    #     = (x @ W[s].T) * scale + shift[s]
    scale = bn_gamma * lax.rsqrt(bn_var + eps)                               # (D_out,)
    shift = (biases - bn_mean[None, :]) * scale[None, :] + bn_beta[None, :]  # (E, D_out)
    ss = jnp.stack(
        [jnp.broadcast_to(scale[None, :], (E, D_out)), shift], axis=1
    )                                                                        # (E, 2, D_out)

    # Pad to TPU-friendly shapes (lane dim -> x128, batch/sublane -> x8). Only copies
    # when the real shapes are unaligned; aligned model shapes pay nothing.
    Dk = _round_up(D_in, 128)
    Dn = _round_up(D_out, 128)
    TM = min(block_b, _round_up(B, 8))
    Bp = _round_up(B, TM)
    TK = min(block_k, Dk)

    if (Bp, Dk) != (B, D_in):
        x = jnp.pad(x, ((0, Bp - B), (0, Dk - D_in)))
    if (Dn, Dk) != (D_out, D_in):
        weights = jnp.pad(weights, ((0, 0), (0, Dn - D_out), (0, Dk - D_in)))
    if Dn != D_out:
        ss = jnp.pad(ss, ((0, 0), (0, 0), (0, Dn - D_out)))

    sample_idx = jnp.asarray([sample], dtype=jnp.int32)  # scalar prefetch arg

    grid = (Bp // TM, Dk // TK)

    cost = pl.CostEstimate(
        flops=2 * Bp * Dk * Dn,
        transcendentals=0,
        bytes_accessed=4 * (Bp * Dk + Dn * Dk + 2 * Dn + Bp * Dn),
    )

    out = pl.pallas_call(
        _ensemble_linear_bn_relu_kernel,
        out_shape=jax.ShapeDtypeStruct((Bp, Dn), x.dtype),
        grid_spec=pltpu.PrefetchScalarGridSpec(
            num_scalar_prefetch=1,
            grid=grid,
            in_specs=[
                pl.BlockSpec((TM, TK), lambda i, k, s: (i, k)),              # x tile
                pl.BlockSpec((None, Dn, TK), lambda i, k, s: (s[0], 0, k)),  # W[sample] K-tile
                pl.BlockSpec((None, 2, Dn), lambda i, k, s: (s[0], 0, 0)),   # scale/shift slab
            ],
            out_specs=pl.BlockSpec((TM, Dn), lambda i, k, s: (i, 0)),
            scratch_shapes=[pltpu.VMEM((TM, Dn), jnp.float32)],
        ),
        compiler_params=pltpu.CompilerParams(
            dimension_semantics=("parallel", "arbitrary"),
            vmem_limit_bytes=48 * 1024 * 1024,
        ),
        cost_estimate=cost,
    )(sample_idx, x, weights, ss)

    return out[:B, :D_out]


def _reference(x, weights, biases, gamma, beta, mean, var, sample, eps):
    y = x @ weights[sample].T + biases[sample]
    y = (y - mean) / jnp.sqrt(var + eps) * gamma + beta
    return jnp.maximum(y, 0.0)


if __name__ == "__main__":
    # Small, deterministic shapes.
    B, D_in, D_out, E = 8, 32, 32, 4
    eps = 1e-3
    sample = 2

    key = jax.random.PRNGKey(0)
    kx, kw, kb, kg, kbeta, km, kv = jax.random.split(key, 7)

    x = jax.random.normal(kx, (B, D_in), dtype=jnp.float32)
    weights = jax.random.normal(kw, (E, D_out, D_in), dtype=jnp.float32) * 0.1
    biases = jax.random.normal(kb, (E, D_out), dtype=jnp.float32) * 0.1
    bn_gamma = 1.0 + 0.1 * jax.random.normal(kg, (D_out,), dtype=jnp.float32)
    bn_beta = 0.1 * jax.random.normal(kbeta, (D_out,), dtype=jnp.float32)
    bn_mean = 0.05 * jax.random.normal(km, (D_out,), dtype=jnp.float32)
    bn_var = 1.0 + 0.1 * jnp.abs(jax.random.normal(kv, (D_out,), dtype=jnp.float32))

    out = layer_ensemble_forward(
        x, weights, biases, bn_gamma, bn_beta, bn_mean, bn_var, sample, eps=eps
    )
    out = jax.block_until_ready(out)

    ref = _reference(x, weights, biases, bn_gamma, bn_beta, bn_mean, bn_var, sample, eps)
    assert out.shape == (B, D_out)
    assert jnp.allclose(out, ref, atol=1e-4, rtol=1e-5), "mismatch vs reference"

    # TODO(synk): the Python-side statefulness (self.sample reset, __COLLECTION registry)
    # and training-mode BatchNorm running-stat updates are host-side / stateful semantics
    # with no kernel equivalent; BN is implemented in eval mode.
    print("KERNEL_OK")
</pallas_src>

<mosaic_0001>
module attributes {stable_mosaic.version = 11 : i64} {
  func.func @_ensemble_linear_bn_relu_kernel(%arg0: i32, %arg1: i32, %arg2: memref<1xi32, #tpu.memory_space<smem>>, %arg3: memref<8x128xf32, #tpu.memory_space<vmem>>, %arg4: memref<1x128x128xf32, #tpu.memory_space<vmem>>, %arg5: memref<1x2x128xf32, #tpu.memory_space<vmem>>, %arg6: memref<8x128xf32, #tpu.memory_space<vmem>>, %arg7: memref<8x128xf32, #tpu.memory_space<vmem>>) attributes {dimension_semantics = [#tpu.dimension_semantics<parallel>, #tpu.dimension_semantics<arbitrary>], iteration_bounds = array<i64: 1, 1>, scalar_prefetch = 1 : i64, scratch_operands = 1 : i64, tpu.core_type = #tpu.core_type<tc>, window_params = [{transform_indices = @transform_0, window_bounds = array<i64: 8, 128>}, {transform_indices = @transform_1, window_bounds = array<i64: 1, 128, 128>}, {transform_indices = @transform_2, window_bounds = array<i64: 1, 2, 128>}, {transform_indices = @transform_3, window_bounds = array<i64: 8, 128>}]} {
    %c0_i32 = arith.constant 0 : i32
    %0 = arith.cmpi eq, %arg1, %c0_i32 : i32
    %1 = arith.extui %0 : i1 to i32
    %c0_i32_0 = arith.constant 0 : i32
    %2 = arith.cmpi ne, %1, %c0_i32_0 : i32
    scf.if %2 {
      %cst_11 = arith.constant 0.000000e+00 : f32
      %13 = vector.broadcast %cst_11 : f32 to vector<8x128xf32>
      %c0_12 = arith.constant 0 : index
      %c0_13 = arith.constant 0 : index
      %14 = vector.load %arg7[%c0_12, %c0_13] : memref<8x128xf32, #tpu.memory_space<vmem>>, vector<8x128xf32>
      tpu.vector_store %arg7[%c0_12, %c0_13], %13 {strides = array<i32>} : memref<8x128xf32, #tpu.memory_space<vmem>>, vector<8x128xf32>,
    } else {
    }
    %c0 = arith.constant 0 : index
    %c0_1 = arith.constant 0 : index
    %3 = vector.load %arg7[%c0, %c0_1] : memref<8x128xf32, #tpu.memory_space<vmem>>, vector<8x128xf32>
    %c0_2 = arith.constant 0 : index
    %c0_3 = arith.constant 0 : index
    %4 = vector.load %arg3[%c0_2, %c0_3] : memref<8x128xf32, #tpu.memory_space<vmem>>, vector<8x128xf32>
    %c0_4 = arith.constant 0 : index
    %c0_5 = arith.constant 0 : index
    %c0_6 = arith.constant 0 : index
    %5 = vector.load %arg4[%c0_4, %c0_5, %c0_6] : memref<1x128x128xf32, #tpu.memory_space<vmem>>, vector<1x128x128xf32>
    %6 = vector.shape_cast %5 : vector<1x128x128xf32> to vector<128x128xf32>
    %cst = arith.constant dense<0.000000e+00> : vector<8x128xf32>
    %7 = tpu.matmul %4, %6, %cst {dimension_numbers = #tpu.dot_dimension_numbers<[1], [1], [0], [0], [0, 0, 1, 0], [], []>} : vector<8x128xf32>, vector<128x128xf32>, vector<8x128xf32> -> vector<8x128xf32>
    %8 = arith.addf %3, %7 : vector<8x128xf32>
    %c0_7 = arith.constant 0 : index
    %c0_8 = arith.constant 0 : index
    %9 = vector.load %arg7[%c0_7, %c0_8] : memref<8x128xf32, #tpu.memory_space<vmem>>, vector<8x128xf32>
    tpu.vector_store %arg7[%c0_7, %c0_8], %8 {strides = array<i32>} : memref<8x128xf32, #tpu.memory_space<vmem>>, vector<8x128xf32>,
    %c0_i32_9 = arith.constant 0 : i32
    %10 = arith.cmpi eq, %arg1, %c0_i32_9 : i32
    %11 = arith.extui %10 : i1 to i32
    %c0_i32_10 = arith.constant 0 : i32
    %12 = arith.cmpi ne, %11, %c0_i32_10 : i32
    scf.if %12 {
      %c0_11 = arith.constant 0 : index
      %c0_12 = arith.constant 0 : index
      %c0_13 = arith.constant 0 : index
      %13 = vector.load %arg5[%c0_11, %c0_12, %c0_13] : memref<1x2x128xf32, #tpu.memory_space<vmem>>, vector<1x2x128xf32>
      %14 = vector.shape_cast %13 : vector<1x2x128xf32> to vector<2x128xf32>
      %15 = vector.extract_strided_slice %14 {offsets = [0, 0], sizes = [1, 128], strides = [1, 1]} : vector<2x128xf32> to vector<1x128xf32>
      %16 = vector.extract_strided_slice %14 {offsets = [1, 0], sizes = [1, 128], strides = [1, 1]} : vector<2x128xf32> to vector<1x128xf32>
      %c0_14 = arith.constant 0 : index
      %c0_15 = arith.constant 0 : index
      %17 = vector.load %arg7[%c0_14, %c0_15] : memref<8x128xf32, #tpu.memory_space<vmem>>, vector<8x128xf32>
      %18 = vector.broadcast %15 : vector<1x128xf32> to vector<8x128xf32>
      %19 = arith.mulf %17, %18 : vector<8x128xf32>
      %20 = vector.broadcast %16 : vector<1x128xf32> to vector<8x128xf32>
      %21 = arith.addf %19, %20 : vector<8x128xf32>
      %cst_16 = arith.constant 0.000000e+00 : f32
      %22 = vector.broadcast %cst_16 : f32 to vector<8x128xf32>
      %23 = arith.maximumf %21, %22 : vector<8x128xf32>
      %c0_17 = arith.constant 0 : index
      %c0_18 = arith.constant 0 : index
      %24 = vector.load %arg6[%c0_17, %c0_18] : memref<8x128xf32, #tpu.memory_space<vmem>>, vector<8x128xf32>
      tpu.vector_store %arg6[%c0_17, %c0_18], %23 {strides = array<i32>} : memref<8x128xf32, #tpu.memory_space<vmem>>, vector<8x128xf32>,
    } else {
    }
    return
  }
  func.func @transform_0(%arg0: i32, %arg1: i32, %arg2: memref<1xi32, #tpu.memory_space<smem>>) -> (i32, i32) {
    %c0_i32 = arith.constant 0 : i32
    return %arg0, %arg1 : i32, i32
  }
  func.func @transform_1(%arg0: i32, %arg1: i32, %arg2: memref<1xi32, #tpu.memory_space<smem>>) -> (i32, i32, i32) {
    %c0 = arith.constant 0 : index
    %0 = memref.load %arg2[%c0] : memref<1xi32, #tpu.memory_space<smem>>
    %c0_i32 = arith.constant 0 : i32
    %c0_i32_0 = arith.constant 0 : i32
    return %0, %c0_i32, %arg1 : i32, i32, i32
  }
  func.func @transform_2(%arg0: i32, %arg1: i32, %arg2: memref<1xi32, #tpu.memory_space<smem>>) -> (i32, i32, i32) {
    %c0 = arith.constant 0 : index
    %0 = memref.load %arg2[%c0] : memref<1xi32, #tpu.memory_space<smem>>
    %c0_i32 = arith.constant 0 : i32
    %c0_i32_0 = arith.constant 0 : i32
    %c0_i32_1 = arith.constant 0 : i32
    return %0, %c0_i32, %c0_i32_0 : i32, i32, i32
  }
  func.func @transform_3(%arg0: i32, %arg1: i32, %arg2: memref<1xi32, #tpu.memory_space<smem>>) -> (i32, i32) {
    %c0_i32 = arith.constant 0 : i32
    %c0_i32_0 = arith.constant 0 : i32
    return %arg0, %c0_i32 : i32, i32
  }
}

</mosaic_0001>

<llo_original>
// kernel: tpu_custom_call.1
$region0: #{tpu_custom_call.1}
  #allocation0 [shape = 'u32[]', space=smem, size = 0x4, offset = 0x4, fixed_abs, tag = 'smem constant byte address 0x4 - core index']
  #allocation1 [shape = 'u32[144,128]{1,0:T(1,128)}', space=vmem, size = 0x12000, scoped, tag = 'internal scratch']
  #allocation2 [shape = 'f32[8,128]{1,0:T(8,128)}', space=vmem, size = 0x1000, scoped, tag = 'scratch operand']
  #allocation3 [shape = 's32[1]{0}', space=sflag, size = 0x4, scoped, tag = 'scoped memory for tpu_custom_call.1']
  #allocation4 [shape = 's32[1]{0:T(128)S(6)}', space=smem, size = 0x200, scoped, tag = 'prefetched SMEM operand 0']
  %s0 = inlined_call_operand.<no memory space> [shape: s32[1], index: 0, kind: input, shape index: {}]
  %s1 = inlined_call_operand.hbm [shape: f32[8,128], index: 1, kind: input, shape index: {}]
  %s2 = inlined_call_operand.hbm [shape: f32[4,128,128], index: 2, kind: input, shape index: {}]
  %s3 = inlined_call_operand.hbm [shape: f32[4,2,128], index: 3, kind: input, shape index: {}]
  %s4 = inlined_call_operand.hbm [shape: f32[8,128], index: 4, kind: output, shape index: {}]
  %s5 = sld [smem:[#allocation0]]
  $region42: #{tpu_custom_call.1} parent=0
    _
  %s7 = ssub.s32 1, %s5
  %s8 = scalar_select 0, %s7, %s5
  %9 = sst [smem:[#allocation4]] %s0
  $region1: #{tpu_custom_call.1} parent=0
    #allocation5 [shape = 'u8[4096]{0}', space=vmem, size = 0x1000, scoped, tag = 'input window, operand 1, single buffered']
    #allocation6 [shape = 's32[1]{0}', space=sflag, size = 0x4, scoped, tag = 'scoped memory for tpu_custom_call.1']
    #allocation7 [shape = 's32[1]{0}', space=sflag, size = 0x4, scoped, tag = 'scoped memory for tpu_custom_call.1']
    #allocation8 [shape = 'u8[65536]{0}', space=vmem, size = 0x10000, scoped, tag = 'input window, operand 2, single buffered']
    #allocation9 [shape = 's32[1]{0}', space=sflag, size = 0x4, scoped, tag = 'scoped memory for tpu_custom_call.1']
    #allocation10 [shape = 'u8[1024]{0}', space=vmem, size = 0x400, scoped, tag = 'input window, operand 3, single buffered']
    #allocation11 [shape = 'u8[4096]{0}', space=vmem, size = 0x1000, scoped, tag = 'output window, operand 0, single buffered']
    %10 = vsyncpa [#allocation6], 0
    %11 = vsyncpa [#allocation9], 0
    %12 = vsyncpa [#allocation7], 0
    // Predicated region
    $region2: #{tpu_custom_call.1} parent=1 // pred_check
      _
    $region3: #{tpu_custom_call.1} parent=1 // pred_check_branch
      %14 = sbr.rel (0) target = $region5
    $region4: #{tpu_custom_call.1} parent=1 // pred_region
      %s16 = ssub.s32 128, 128
      %17 = vsyncadd [#allocation6], %s16
      %s19 = sshll.u32 [#allocation5], 4
      %s20 = int_to_ptr.vmem [resolvable:$true] %s19
      %22 = dma.hbm_to_vmem [thread:$0]  %s1, 128, %s20, [#allocation6]
    $region5: #{tpu_custom_call.1} parent=1 // pred_fallthru
      _
    // Predicated region
    $region6: #{tpu_custom_call.1} parent=1 // pred_check
      _
    $region7: #{tpu_custom_call.1} parent=1 // pred_check_branch
      %24 = sbr.rel (0) target = $region9
    $region8: #{tpu_custom_call.1} parent=1 // pred_region
      %s25 = sld [smem:[#allocation4]]
      %s27 = ssub.s32 2048, 2048
      %28 = vsyncadd [#allocation9], %s27
      %s29 = smul.addr %s25, 16
      %s30 = smul.addr %s29, 128
      %s31 = scalar_lea.hbm %s2, %s30
      %s32 = sshll.u32 [#allocation8], 4
      %s33 = int_to_ptr.vmem [resolvable:$true] %s32
      %38 = dma.hbm_to_vmem [thread:$0]  %s31, 2048, %s33, [#allocation9], 128, 128, 8
    $region9: #{tpu_custom_call.1} parent=1 // pred_fallthru
      _
    // Predicated region
    $region10: #{tpu_custom_call.1} parent=1 // pred_check
      _
    $region11: #{tpu_custom_call.1} parent=1 // pred_check_branch
      %40 = sbr.rel (0) target = $region13
    $region12: #{tpu_custom_call.1} parent=1 // pred_region
      %s41 = sld [smem:[#allocation4]]
      %s43 = ssub.s32 32, 32
      %44 = vsyncadd [#allocation9], %s43
      %s45 = smul.addr %s41, 32
      %s46 = scalar_lea.hbm %s3, %s45
      %s48 = sshll.u32 [#allocation10], 4
      %s49 = int_to_ptr.vmem [resolvable:$true] %s48
      %51 = dma.hbm_to_vmem [thread:$0]  %s46, 32, %s49, [#allocation9]
    $region13: #{tpu_custom_call.1} parent=1 // pred_fallthru
      _
    // Predicated region
    $region14: #{tpu_custom_call.1} parent=1 // pred_check
      _
    $region15: #{tpu_custom_call.1} parent=1 // pred_check_branch
      %53 = sbr.rel (0) target = $region17
    $region16: #{tpu_custom_call.1} parent=1 // pred_region
      %54 = dma.done [#allocation6], 128
    $region17: #{tpu_custom_call.1} parent=1 // pred_fallthru
      _
    // Predicated region
    $region18: #{tpu_custom_call.1} parent=1 // pred_check
      _
    $region19: #{tpu_custom_call.1} parent=1 // pred_check_branch
      %56 = sbr.rel (0) target = $region21
    $region20: #{tpu_custom_call.1} parent=1 // pred_region
      %57 = dma.done [#allocation9], 2048
    $region21: #{tpu_custom_call.1} parent=1 // pred_fallthru
      _
    // Predicated region
    $region22: #{tpu_custom_call.1} parent=1 // pred_check
      _
    $region23: #{tpu_custom_call.1} parent=1 // pred_check_branch
      %59 = sbr.rel (0) target = $region25
    $region24: #{tpu_custom_call.1} parent=1 // pred_region
      %60 = dma.done [#allocation9], 32
    $region25: #{tpu_custom_call.1} parent=1 // pred_fallthru
      _
    %s61 = sld [smem:[#allocation4]]
    %s62 = sld [smem:[#allocation4]]
    %p63 = scmp.eq.s32.totalorder 0, 0
    // Predicated region
    $region26: #{tpu_custom_call.1} parent=1 // pred_check
      %p64 = pneg %p63
    $region27: #{tpu_custom_call.1} parent=1 // pred_check_branch
      %66 = sbr.rel (%p64) target = $region29
    $region28: #{tpu_custom_call.1} parent=1 // pred_region
      %67 = vst [vmem:[#allocation2] sm:$0xff] 0.0
    $region29: #{tpu_custom_call.1} parent=1 // pred_fallthru
      _
    %v68 = vld [vmem:[#allocation2] sm:$0xff]
    %v69 = vld [vmem:[#allocation5] sm:$0xff]
    %v70 = vld [vmem:[#allocation8] sm:$0xff]
    %v71 = vld [vmem:[#allocation8 + $0x8] sm:$0xff]
    %v72 = vld [vmem:[#allocation8 + $0x10] sm:$0xff]
    %v73 = vld [vmem:[#allocation8 + $0x18] sm:$0xff]
    %v74 = vld [vmem:[#allocation8 + $0x20] sm:$0xff]
    %v75 = vld [vmem:[#allocation8 + $0x28] sm:$0xff]
    %v76 = vld [vmem:[#allocation8 + $0x30] sm:$0xff]
    %v77 = vld [vmem:[#allocation8 + $0x38] sm:$0xff]
    %v78 = vld [vmem:[#allocation8 + $0x40] sm:$0xff]
    %v79 = vld [vmem:[#allocation8 + $0x48] sm:$0xff]
    %v80 = vld [vmem:[#allocation8 + $0x50] sm:$0xff]
    %v81 = vld [vmem:[#allocation8 + $0x58] sm:$0xff]
    %v82 = vld [vmem:[#allocation8 + $0x60] sm:$0xff]
    %v83 = vld [vmem:[#allocation8 + $0x68] sm:$0xff]
    %v84 = vld [vmem:[#allocation8 + $0x70] sm:$0xff]
    %v85 = vld [vmem:[#allocation8 + $0x78] sm:$0xff]
    %86 = vmatprep.subr.mxu0 0.0
    %87 = vmatpush1.xpose.msra.mxu0 %v85
    %88 = vmatprep.subr.mxu0 0.0
    %89 = vmatpush1.xpose.msra.mxu0 %v84
    %90 = vmatprep.subr.mxu0 0.0
    %91 = vmatpush1.xpose.msra.mxu0 %v83
    %92 = vmatprep.subr.mxu0 0.0
    %93 = vmatpush1.xpose.msra.mxu0 %v82
    %94 = vmatprep.subr.mxu0 0.0
    %95 = vmatpush1.xpose.msra.mxu0 %v81
    %96 = vmatprep.subr.mxu0 0.0
    %97 = vmatpush1.xpose.msra.mxu0 %v80
    %98 = vmatprep.subr.mxu0 0.0
    %99 = vmatpush1.xpose.msra.mxu0 %v79
    %100 = vmatprep.subr.mxu0 0.0
    %101 = vmatpush1.xpose.msra.mxu0 %v78
    %102 = vmatprep.subr.mxu0 0.0
    %103 = vmatpush1.xpose.msra.mxu0 %v77
    %104 = vmatprep.subr.mxu0 0.0
    %105 = vmatpush1.xpose.msra.mxu0 %v76
    %106 = vmatprep.subr.mxu0 0.0
    %107 = vmatpush1.xpose.msra.mxu0 %v75
    %108 = vmatprep.subr.mxu0 0.0
    %109 = vmatpush1.xpose.msra.mxu0 %v74
    %110 = vmatprep.subr.mxu0 0.0
    %111 = vmatpush1.xpose.msra.mxu0 %v73
    %112 = vmatprep.subr.mxu0 0.0
    %113 = vmatpush1.xpose.msra.mxu0 %v72
    %114 = vmatprep.subr.mxu0 0.0
    %115 = vmatpush1.xpose.msra.mxu0 %v71
    %116 = vmatprep.subr.mxu0 0.0
    %117 = vmatpush1.xpose.msra.mxu0 %v70
    %118 = vmatprep.subr.mxu0 0.0
    %119 = vmatpush2.xpose.msra.mxu0 0.0
    %120 = vmatprep.subr.mxu0 0.0
    %121 = vmatpush2.xpose.msra.mxu0 0.0
    %122 = vmatprep.subr.mxu0 0.0
    %123 = vmatpush2.xpose.msra.mxu0 0.0
    %124 = vmatprep.subr.mxu0 0.0
    %125 = vmatpush2.xpose.msra.mxu0 0.0
    %126 = vmatprep.subr.mxu0 0.0
    %127 = vmatpush2.xpose.msra.mxu0 0.0
    %128 = vmatprep.subr.mxu0 0.0
    %129 = vmatpush2.xpose.msra.mxu0 0.0
    %130 = vmatprep.subr.mxu0 0.0
    %131 = vmatpush2.xpose.msra.mxu0 0.0
    %132 = vmatprep.subr.mxu0 0.0
    %133 = vmatpush2.xpose.msra.mxu0 0.0
    %134 = vmatprep.subr.mxu0 0.0
    %135 = vmatpush2.xpose.msra.mxu0 0.0
    %136 = vmatprep.subr.mxu0 0.0
    %137 = vmatpush2.xpose.msra.mxu0 0.0
    %138 = vmatprep.subr.mxu0 0.0
    %139 = vmatpush2.xpose.msra.mxu0 0.0
    %140 = vmatprep.subr.mxu0 0.0
    %141 = vmatpush2.xpose.msra.mxu0 0.0
    %142 = vmatprep.subr.mxu0 0.0
    %143 = vmatpush2.xpose.msra.mxu0 0.0
    %144 = vmatprep.subr.mxu0 0.0
    %145 = vmatpush2.xpose.msra.mxu0 0.0
    %146 = vmatprep.subr.mxu0 0.0
    %147 = vmatpush2.xpose.msra.mxu0 0.0
    %148 = vmatprep.subr.mxu0 0.0
    %149 = vmatpush2.xpose.msra.mxu0 0.0
    %150 = vmatprep.mubr.f32.mxu0 0.0
    %151 = vmatmul.mubr.f32.gmra.mxu0 %v69
    %v152 = vpop.f32.mrf.mxu0
    %v153 = vadd.f32 0.0, %v152
    %v154 = vpop.f32.mrf.mxu0
    %155 = vdwg.mxu0
    %v156 = vadd.f32 %v68, %v153
    %157 = vst [vmem:[#allocation2] sm:$0xff] %v156
    // Predicated region
    $region30: #{tpu_custom_call.1} parent=1 // pred_check
      %p158 = pneg %p63
    $region31: #{tpu_custom_call.1} parent=1 // pred_check_branch
      %160 = sbr.rel (%p158) target = $region33
    $region32: #{tpu_custom_call.1} parent=1 // pred_region
      %v161 = vld [vmem:[#allocation10] sm:$0x3]
      %v162 = vld [vmem:[#allocation2] sm:$0xff]
      %v163 = vlaneseq
      %v164 = vshrl.u32 %v163, 7
      %v165 = vsub.s32 0, %v164
      %v166 = vrot.slane %v161, %v165
      %v167 = vmul.f32 %v162, %v166
      %v168 = vlaneseq
      %v169 = vshrl.u32 %v168, 7
      %v170 = vsub.s32 1, %v169
      %v171 = vrot.slane %v161, %v170
      %v172 = vadd.f32 %v167, %v171
      %v173 = vmax.f32 %v172, 0.0
      %174 = vst [vmem:[#allocation11] sm:$0xff] %v173
    $region33: #{tpu_custom_call.1} parent=1 // pred_fallthru
      _
    // Predicated region
    $region34: #{tpu_custom_call.1} parent=1 // pred_check
      _
    $region35: #{tpu_custom_call.1} parent=1 // pred_check_branch
      %176 = sbr.rel (0) target = $region37
    $region36: #{tpu_custom_call.1} parent=1 // pred_region
      %s178 = ssub.s32 128, 128
      %179 = vsyncadd [#allocation7], %s178
      %s181 = sshll.u32 [#allocation11], 4
      %s182 = int_to_ptr.vmem [resolvable:$true] %s181
      %184 = dma.vmem_to_hbm [thread:$0]  %s182, 128, %s4, [#allocation7]
    $region37: #{tpu_custom_call.1} parent=1 // pred_fallthru
      _
    // Predicated region
    $region38: #{tpu_custom_call.1} parent=1 // pred_check
      _
    $region39: #{tpu_custom_call.1} parent=1 // pred_check_branch
      %186 = sbr.rel (0) target = $region41
    $region40: #{tpu_custom_call.1} parent=1 // pred_region
      %187 = dma.done [#allocation7], 128
    $region41: #{tpu_custom_call.1} parent=1 // pred_fallthru
      _
    %188 = vsyncpa [#allocation6], 1
    %189 = vsyncpa [#allocation9], 1
    %190 = vsyncpa [#allocation7], 1

</llo_original>
